<compile_context>
chip_gen: v6e
topology: v6e:2x2x1
jax: 0.10.0
libtpu: 0.0.40
codegen_flags: <defaults>
</compile_context>

<pallas_src>
import functools

import jax
import jax.numpy as jnp
from jax.experimental import pallas as pl
from jax.experimental.pallas import tpu as pltpu  # noqa: F401  (TPU backend)

BN_EPS = 1e-5
LANE = 128  # lane width: pad hidden feature dims to this for dense MXU tiles


def _full_spec(shape):
    # Full-array block (block_shape == array shape), single grid point.
    shape = tuple(int(s) for s in shape)
    return pl.BlockSpec(shape, lambda: (0,) * len(shape))


# ---------------------------------------------------------------------------
# One fused kernel: the entire ZNet forward.
# ---------------------------------------------------------------------------
def _znet_kernel(*refs, layer_num):
    # refs = (x, w0, [w_mid if layer_num > 1], w_head, p, b_out, out)
    if layer_num > 1:
        x_ref, w0_ref, wmid_ref, whead_ref, p_ref, bout_ref, o_ref = refs
    else:
        x_ref, w0_ref, whead_ref, p_ref, bout_ref, o_ref = refs
        wmid_ref = None

    x = x_ref[...].astype(jnp.float32)   # (B, dim_in)   -- mirrors .to(float32)
    p = p_ref[...]                       # (P, 128) packed gammas / betas

    for i in range(layer_num):           # unrolled at trace time
        w = w0_ref[...] if i == 0 else wmid_ref[i - 1]
        # Linear (bias dropped: cancels exactly in batch-stat BN)
        y = jnp.dot(x, w, preferred_element_type=jnp.float32)        # (B, 128)
        # BatchNorm1d, training-mode batch statistics (biased variance)
        mean = jnp.mean(y, axis=0, keepdims=True)                    # (1, 128)
        d = y - mean
        var = jnp.mean(d * d, axis=0, keepdims=True)
        scale = p[2 * i:2 * i + 1, :] * jax.lax.rsqrt(var + BN_EPS)  # gamma*rsqrt
        beta = p[2 * i + 1:2 * i + 2, :]
        # ReLU
        x = jnp.maximum(d * scale + beta, 0.0)

    # Head: Linear + Sigmoid, computed directly at dim_latent lanes.
    y = jnp.dot(x, whead_ref[...], preferred_element_type=jnp.float32)
    o_ref[...] = jax.nn.sigmoid(y + bout_ref[...])                   # (B, dim_latent)


# ---------------------------------------------------------------------------
# Parameters: PyTorch-shaped init + one-time packing into lane-dense slabs.
# ---------------------------------------------------------------------------
def init_znet_params(key, dim_in, dim_latent, dim_out, layer_num):
    """Synthetic init matching the PyTorch module's shapes.

    Linear weights stored pre-transposed as (in, out) so the kernel does
    x @ W directly (PyTorch stores (out, in) and computes x @ W.T).
    """
    params = {"mlp": [], "out": {}}
    for i in range(layer_num):
        d_i = dim_in - (dim_in - dim_out) * i // layer_num
        d_o = dim_in - (dim_in - dim_out) * (i + 1) // layer_num
        key, kw, kb = jax.random.split(key, 3)
        bound = 1.0 / jnp.sqrt(d_i)
        params["mlp"].append({
            "w": jax.random.uniform(kw, (d_i, d_o), jnp.float32, -bound, bound),
            "b": jax.random.uniform(kb, (d_o,), jnp.float32, -bound, bound),
            "gamma": jnp.ones((d_o,), jnp.float32),   # BatchNorm1d default init
            "beta": jnp.zeros((d_o,), jnp.float32),
        })
    key, kw, kb = jax.random.split(key, 3)
    bound = 1.0 / jnp.sqrt(dim_out)
    params["out"] = {
        "w": jax.random.uniform(kw, (dim_out, dim_latent), jnp.float32, -bound, bound),
        "b": jax.random.uniform(kb, (dim_latent,), jnp.float32, -bound, bound),
    }
    return params


def pack_znet_params(params):
    """One-time packing into lane-dense arrays fed to the fused kernel.

    NOTE: the pre-BN Linear biases are intentionally NOT packed -- they are
    mathematically irrelevant before batch-statistic BatchNorm.
    """
    mlp = params["mlp"]
    layer_num = len(mlp)
    for l in mlp:
        assert l["w"].shape[0] <= LANE and l["w"].shape[1] <= LANE

    packed = []
    w0 = mlp[0]["w"]                                             # (dim_in, d_o0)
    packed.append(jnp.pad(w0, ((0, 0), (0, LANE - w0.shape[1]))))        # (dim_in, 128)
    if layer_num > 1:
        packed.append(jnp.stack([
            jnp.pad(l["w"], ((0, LANE - l["w"].shape[0]), (0, LANE - l["w"].shape[1])))
            for l in mlp[1:]
        ]))                                                              # (L-1, 128, 128)
    w_head = params["out"]["w"]                                  # (dim_out, dim_latent)
    assert w_head.shape[0] <= LANE
    packed.append(jnp.pad(w_head, ((0, LANE - w_head.shape[0]), (0, 0))))  # (128, dim_latent)

    rows = []
    for l in mlp:
        rows.append(jnp.pad(l["gamma"], (0, LANE - l["gamma"].shape[0])))
        rows.append(jnp.pad(l["beta"], (0, LANE - l["beta"].shape[0])))
    rows.extend([jnp.zeros((LANE,), jnp.float32)] * ((-len(rows)) % 8))
    packed.append(jnp.stack(rows))                                       # (ceil8(2L), 128)
    packed.append(params["out"]["b"].reshape(1, -1))                     # (1, dim_latent)
    return tuple(packed)


# ---------------------------------------------------------------------------
# Forward: single fused pallas_call, no wrapper-side pad/slice ops.
# ---------------------------------------------------------------------------
def make_znet_forward(dim_latent, layer_num):
    kernel = functools.partial(_znet_kernel, layer_num=layer_num)

    @jax.jit
    def forward(packed, x):
        B = x.shape[0]
        operands = (x,) + tuple(packed)
        return pl.pallas_call(
            kernel,
            out_shape=jax.ShapeDtypeStruct((B, dim_latent), jnp.float32),
            grid=(),
            in_specs=[_full_spec(op.shape) for op in operands],
            out_specs=_full_spec((B, dim_latent)),
        )(*operands)

    return forward


# ---------------------------------------------------------------------------
# Pure-JAX reference (spec-faithful, including the pre-BN linear bias).
# ---------------------------------------------------------------------------
def znet_reference(params, x):
    x_rep = x.astype(jnp.float32)
    for l in params["mlp"]:
        y = x_rep @ l["w"] + l["b"]
        mean = jnp.mean(y, axis=0, keepdims=True)
        var = jnp.mean((y - mean) ** 2, axis=0, keepdims=True)
        y = (y - mean) * jax.lax.rsqrt(var + BN_EPS)
        x_rep = jnp.maximum(y * l["gamma"] + l["beta"], 0.0)
    return jax.nn.sigmoid(x_rep @ params["out"]["w"] + params["out"]["b"])


if __name__ == "__main__":
    # config: z_dim_in=32, generator_dim_latent=8, z_dim_out=16, z_layer_num=2
    dim_in, dim_latent, dim_out, layer_num = 32, 8, 16, 2
    batch = 8

    key = jax.random.PRNGKey(0)
    kx, kp = jax.random.split(key)
    x = jax.random.normal(kx, (batch, dim_in), dtype=jnp.float32)
    params = init_znet_params(kp, dim_in, dim_latent, dim_out, layer_num)
    packed = pack_znet_params(params)

    forward = make_znet_forward(dim_latent, layer_num)
    label = jax.block_until_ready(forward(packed, x))

    ref = znet_reference(params, x)
    assert label.shape == (batch, dim_latent)
    assert jnp.allclose(label, ref, atol=1e-5, rtol=1e-5), float(jnp.max(jnp.abs(label - ref)))

    print("KERNEL_OK")
</pallas_src>

<mosaic_0001>
module attributes {stable_mosaic.version = 11 : i64} {
  func.func @_znet_kernel(%arg0: memref<8x32xf32, #tpu.memory_space<vmem>>, %arg1: memref<32x128xf32, #tpu.memory_space<vmem>>, %arg2: memref<1x128x128xf32, #tpu.memory_space<vmem>>, %arg3: memref<128x8xf32, #tpu.memory_space<vmem>>, %arg4: memref<8x128xf32, #tpu.memory_space<vmem>>, %arg5: memref<1x8xf32, #tpu.memory_space<vmem>>, %arg6: memref<8x8xf32, #tpu.memory_space<vmem>>) attributes {dimension_semantics = [], scalar_prefetch = 0 : i64, scratch_operands = 0 : i64, tpu.core_type = #tpu.core_type<tc>} {
    %c0 = arith.constant 0 : index
    %c0_0 = arith.constant 0 : index
    %0 = vector.load %arg0[%c0, %c0_0] : memref<8x32xf32, #tpu.memory_space<vmem>>, vector<8x32xf32>
    %c0_1 = arith.constant 0 : index
    %c0_2 = arith.constant 0 : index
    %1 = vector.load %arg4[%c0_1, %c0_2] : memref<8x128xf32, #tpu.memory_space<vmem>>, vector<8x128xf32>
    %c0_3 = arith.constant 0 : index
    %c0_4 = arith.constant 0 : index
    %2 = vector.load %arg1[%c0_3, %c0_4] : memref<32x128xf32, #tpu.memory_space<vmem>>, vector<32x128xf32>
    %cst = arith.constant dense<0.000000e+00> : vector<8x128xf32>
    %3 = tpu.matmul %0, %2, %cst {dimension_numbers = #tpu.dot_dimension_numbers<[1], [0], [0], [1], [0, 0, 1, 1], [], []>} : vector<8x32xf32>, vector<32x128xf32>, vector<8x128xf32> -> vector<8x128xf32>
    %cst_5 = arith.constant dense<0.000000e+00> : vector<128xf32>
    %4 = vector.multi_reduction <add>, %3, %cst_5 [0] : vector<8x128xf32> to vector<128xf32>
    %5 = vector.shape_cast %4 : vector<128xf32> to vector<1x128xf32>
    %cst_6 = arith.constant 8.000000e+00 : f32
    %6 = vector.broadcast %cst_6 : f32 to vector<1x128xf32>
    %7 = arith.divf %5, %6 : vector<1x128xf32>
    %8 = vector.broadcast %7 : vector<1x128xf32> to vector<8x128xf32>
    %9 = arith.subf %3, %8 : vector<8x128xf32>
    %10 = arith.mulf %9, %9 : vector<8x128xf32>
    %cst_7 = arith.constant dense<0.000000e+00> : vector<128xf32>
    %11 = vector.multi_reduction <add>, %10, %cst_7 [0] : vector<8x128xf32> to vector<128xf32>
    %12 = vector.shape_cast %11 : vector<128xf32> to vector<1x128xf32>
    %cst_8 = arith.constant 8.000000e+00 : f32
    %13 = vector.broadcast %cst_8 : f32 to vector<1x128xf32>
    %14 = arith.divf %12, %13 : vector<1x128xf32>
    %15 = vector.extract_strided_slice %1 {offsets = [0, 0], sizes = [1, 128], strides = [1, 1]} : vector<8x128xf32> to vector<1x128xf32>
    %cst_9 = arith.constant 9.99999974E-6 : f32
    %16 = vector.broadcast %cst_9 : f32 to vector<1x128xf32>
    %17 = arith.addf %14, %16 : vector<1x128xf32>
    %18 = math.rsqrt %17 : vector<1x128xf32>
    %19 = arith.mulf %15, %18 : vector<1x128xf32>
    %20 = vector.extract_strided_slice %1 {offsets = [1, 0], sizes = [1, 128], strides = [1, 1]} : vector<8x128xf32> to vector<1x128xf32>
    %21 = vector.broadcast %19 : vector<1x128xf32> to vector<8x128xf32>
    %22 = arith.mulf %9, %21 : vector<8x128xf32>
    %23 = vector.broadcast %20 : vector<1x128xf32> to vector<8x128xf32>
    %24 = arith.addf %22, %23 : vector<8x128xf32>
    %cst_10 = arith.constant 0.000000e+00 : f32
    %25 = vector.broadcast %cst_10 : f32 to vector<8x128xf32>
    %26 = arith.maximumf %24, %25 : vector<8x128xf32>
    %c0_11 = arith.constant 0 : index
    %c0_12 = arith.constant 0 : index
    %c0_13 = arith.constant 0 : index
    %27 = vector.load %arg2[%c0_11, %c0_12, %c0_13] : memref<1x128x128xf32, #tpu.memory_space<vmem>>, vector<1x128x128xf32>
    %28 = vector.shape_cast %27 : vector<1x128x128xf32> to vector<128x128xf32>
    %cst_14 = arith.constant dense<0.000000e+00> : vector<8x128xf32>
    %29 = tpu.matmul %26, %28, %cst_14 {dimension_numbers = #tpu.dot_dimension_numbers<[1], [0], [0], [1], [0, 0, 1, 1], [], []>} : vector<8x128xf32>, vector<128x128xf32>, vector<8x128xf32> -> vector<8x128xf32>
    %cst_15 = arith.constant dense<0.000000e+00> : vector<128xf32>
    %30 = vector.multi_reduction <add>, %29, %cst_15 [0] : vector<8x128xf32> to vector<128xf32>
    %31 = vector.shape_cast %30 : vector<128xf32> to vector<1x128xf32>
    %cst_16 = arith.constant 8.000000e+00 : f32
    %32 = vector.broadcast %cst_16 : f32 to vector<1x128xf32>
    %33 = arith.divf %31, %32 : vector<1x128xf32>
    %34 = vector.broadcast %33 : vector<1x128xf32> to vector<8x128xf32>
    %35 = arith.subf %29, %34 : vector<8x128xf32>
    %36 = arith.mulf %35, %35 : vector<8x128xf32>
    %cst_17 = arith.constant dense<0.000000e+00> : vector<128xf32>
    %37 = vector.multi_reduction <add>, %36, %cst_17 [0] : vector<8x128xf32> to vector<128xf32>
    %38 = vector.shape_cast %37 : vector<128xf32> to vector<1x128xf32>
    %cst_18 = arith.constant 8.000000e+00 : f32
    %39 = vector.broadcast %cst_18 : f32 to vector<1x128xf32>
    %40 = arith.divf %38, %39 : vector<1x128xf32>
    %41 = vector.extract_strided_slice %1 {offsets = [2, 0], sizes = [1, 128], strides = [1, 1]} : vector<8x128xf32> to vector<1x128xf32>
    %cst_19 = arith.constant 9.99999974E-6 : f32
    %42 = vector.broadcast %cst_19 : f32 to vector<1x128xf32>
    %43 = arith.addf %40, %42 : vector<1x128xf32>
    %44 = math.rsqrt %43 : vector<1x128xf32>
    %45 = arith.mulf %41, %44 : vector<1x128xf32>
    %46 = vector.extract_strided_slice %1 {offsets = [3, 0], sizes = [1, 128], strides = [1, 1]} : vector<8x128xf32> to vector<1x128xf32>
    %47 = vector.broadcast %45 : vector<1x128xf32> to vector<8x128xf32>
    %48 = arith.mulf %35, %47 : vector<8x128xf32>
    %49 = vector.broadcast %46 : vector<1x128xf32> to vector<8x128xf32>
    %50 = arith.addf %48, %49 : vector<8x128xf32>
    %cst_20 = arith.constant 0.000000e+00 : f32
    %51 = vector.broadcast %cst_20 : f32 to vector<8x128xf32>
    %52 = arith.maximumf %50, %51 : vector<8x128xf32>
    %c0_21 = arith.constant 0 : index
    %c0_22 = arith.constant 0 : index
    %53 = vector.load %arg3[%c0_21, %c0_22] : memref<128x8xf32, #tpu.memory_space<vmem>>, vector<128x8xf32>
    %cst_23 = arith.constant dense<0.000000e+00> : vector<8x8xf32>
    %54 = tpu.matmul %52, %53, %cst_23 {dimension_numbers = #tpu.dot_dimension_numbers<[1], [0], [0], [1], [0, 0, 1, 1], [], []>} : vector<8x128xf32>, vector<128x8xf32>, vector<8x8xf32> -> vector<8x8xf32>
    %c0_24 = arith.constant 0 : index
    %c0_25 = arith.constant 0 : index
    %55 = vector.load %arg5[%c0_24, %c0_25] : memref<1x8xf32, #tpu.memory_space<vmem>>, vector<1x8xf32>
    %56 = vector.broadcast %55 : vector<1x8xf32> to vector<8x8xf32>
    %57 = arith.addf %54, %56 : vector<8x8xf32>
    %58 = arith.negf %57 : vector<8x8xf32>
    %59 = math.exp %58 : vector<8x8xf32>
    %cst_26 = arith.constant 1.000000e+00 : f32
    %60 = vector.broadcast %cst_26 : f32 to vector<8x8xf32>
    %61 = arith.addf %60, %59 : vector<8x8xf32>
    %62 = arith.divf %60, %61 : vector<8x8xf32>
    %c0_27 = arith.constant 0 : index
    %c0_28 = arith.constant 0 : index
    %63 = vector.load %arg6[%c0_27, %c0_28] : memref<8x8xf32, #tpu.memory_space<vmem>>, vector<8x8xf32>
    tpu.vector_store %arg6[%c0_27, %c0_28], %62 {strides = array<i32>} : memref<8x8xf32, #tpu.memory_space<vmem>>, vector<8x8xf32>,
    return
  }
}

</mosaic_0001>

<llo_original>
// kernel: forward.1
$region0: #{forward.1}
  #allocation0 [shape = 'u32[]', space=smem, size = 0x4, offset = 0x4, fixed_abs, tag = 'smem constant byte address 0x4 - core index']
  #allocation1 [shape = 'u32[144,128]{1,0:T(1,128)}', space=vmem, size = 0x12000, scoped, tag = 'internal scratch']
  %s0 = inlined_call_operand.vmem [shape: f32[8,32], index: 0, kind: input, shape index: {}]
  %s1 = inlined_call_operand.hbm [shape: f32[32,128], index: 1, kind: input, shape index: {}]
  %s2 = inlined_call_operand.vmem [shape: f32[1,128,128], index: 2, kind: input, shape index: {}]
  %s3 = inlined_call_operand.vmem [shape: f32[128,8], index: 3, kind: input, shape index: {}]
  %s4 = inlined_call_operand.hbm [shape: f32[8,128], index: 4, kind: input, shape index: {}]
  %s5 = inlined_call_operand.vmem [shape: f32[1,8], index: 5, kind: input, shape index: {}]
  %s6 = inlined_call_operand.hbm [shape: f32[8,8], index: 6, kind: output, shape index: {}]
  %s7 = sld [smem:[#allocation0]]
  $region42: #{forward.1} parent=0
    _
  %s9 = ssub.s32 1, %s7
  %s10 = scalar_select 0, %s9, %s7
  $region1: #{forward.1} parent=0
    #allocation2 [shape = 'u8[16384]{0}', space=vmem, size = 0x4000, scoped, tag = 'input window, operand 1, single buffered']
    #allocation3 [shape = 's32[1]{0}', space=sflag, size = 0x4, scoped, tag = 'scoped memory for forward.1']
    #allocation4 [shape = 's32[1]{0}', space=sflag, size = 0x4, scoped, tag = 'scoped memory for forward.1']
    #allocation5 [shape = 'u8[4096]{0}', space=vmem, size = 0x1000, scoped, tag = 'input window, operand 4, single buffered']
    #allocation6 [shape = 's32[1]{0}', space=sflag, size = 0x4, scoped, tag = 'scoped memory for forward.1']
    #allocation7 [shape = 'u8[4096]{0}', space=vmem, size = 0x1000, scoped, tag = 'output window, operand 0, single buffered']
    %11 = vsyncpa [#allocation3], 0
    %12 = vsyncpa [#allocation6], 0
    %13 = vsyncpa [#allocation4], 0
    // Predicated region
    $region2: #{forward.1} parent=1 // pred_check
      _
    $region3: #{forward.1} parent=1 // pred_check_branch
      %15 = sbr.rel (0) target = $region5
    $region4: #{forward.1} parent=1 // pred_region
      _
    $region5: #{forward.1} parent=1 // pred_fallthru
      _
    // Predicated region
    $region6: #{forward.1} parent=1 // pred_check
      _
    $region7: #{forward.1} parent=1 // pred_check_branch
      %17 = sbr.rel (0) target = $region9
    $region8: #{forward.1} parent=1 // pred_region
      %s19 = ssub.s32 512, 512
      %20 = vsyncadd [#allocation3], %s19
      %s21 = sshll.u32 [#allocation2], 4
      %s22 = int_to_ptr.vmem [resolvable:$true] %s21
      %27 = dma.hbm_to_vmem [thread:$0]  %s1, 512, %s22, [#allocation3], 128, 128, 8
    $region9: #{forward.1} parent=1 // pred_fallthru
      _
    // Predicated region
    $region10: #{forward.1} parent=1 // pred_check
      _
    $region11: #{forward.1} parent=1 // pred_check_branch
      %29 = sbr.rel (0) target = $region13
    $region12: #{forward.1} parent=1 // pred_region
      _
    $region13: #{forward.1} parent=1 // pred_fallthru
      _
    // Predicated region
    $region14: #{forward.1} parent=1 // pred_check
      _
    $region15: #{forward.1} parent=1 // pred_check_branch
      %31 = sbr.rel (0) target = $region17
    $region16: #{forward.1} parent=1 // pred_region
      _
    $region17: #{forward.1} parent=1 // pred_fallthru
      _
    // Predicated region
    $region18: #{forward.1} parent=1 // pred_check
      _
    $region19: #{forward.1} parent=1 // pred_check_branch
      %33 = sbr.rel (0) target = $region21
    $region20: #{forward.1} parent=1 // pred_region
      %s35 = ssub.s32 128, 128
      %36 = vsyncadd [#allocation6], %s35
      %s38 = sshll.u32 [#allocation5], 4
      %s39 = int_to_ptr.vmem [resolvable:$true] %s38
      %41 = dma.hbm_to_vmem [thread:$0]  %s4, 128, %s39, [#allocation6]
    $region21: #{forward.1} parent=1 // pred_fallthru
      _
    // Predicated region
    $region22: #{forward.1} parent=1 // pred_check
      _
    $region23: #{forward.1} parent=1 // pred_check_branch
      %43 = sbr.rel (0) target = $region25
    $region24: #{forward.1} parent=1 // pred_region
      _
    $region25: #{forward.1} parent=1 // pred_fallthru
      _
    // Predicated region
    $region26: #{forward.1} parent=1 // pred_check
      _
    $region27: #{forward.1} parent=1 // pred_check_branch
      %45 = sbr.rel (0) target = $region29
    $region28: #{forward.1} parent=1 // pred_region
      %46 = dma.done [#allocation3], 512
    $region29: #{forward.1} parent=1 // pred_fallthru
      _
    // Predicated region
    $region30: #{forward.1} parent=1 // pred_check
      _
    $region31: #{forward.1} parent=1 // pred_check_branch
      %48 = sbr.rel (0) target = $region33
    $region32: #{forward.1} parent=1 // pred_region
      %49 = dma.done [#allocation6], 128
    $region33: #{forward.1} parent=1 // pred_fallthru
      _
    %v50 = vld [vmem:[%s0] sm:$0xff]
    %v51 = vld [vmem:[#allocation5] sm:$0xff]
    %v52 = vld [vmem:[#allocation2] sm:$0xff]
    %v53 = vld [vmem:[#allocation2 + $0x8] sm:$0xff]
    %v54 = vld [vmem:[#allocation2 + $0x10] sm:$0xff]
    %v55 = vld [vmem:[#allocation2 + $0x18] sm:$0xff]
    %vm56 = vcmask 261120
    %v58 = vsel %vm56, %v50, 0
    %60 = vmatprep.subr.mxu0 0.0
    %61 = vmatpush1.msra.mxu0 0.0
    %62 = vmatprep.subr.mxu0 0.0
    %63 = vmatpush1.msra.mxu0 0.0
    %64 = vmatprep.subr.mxu0 0.0
    %65 = vmatpush1.msra.mxu0 0.0
    %66 = vmatprep.subr.mxu0 0.0
    %67 = vmatpush1.msra.mxu0 0.0
    %68 = vmatprep.subr.mxu0 0.0
    %69 = vmatpush1.msra.mxu0 0.0
    %70 = vmatprep.subr.mxu0 0.0
    %71 = vmatpush1.msra.mxu0 0.0
    %72 = vmatprep.subr.mxu0 0.0
    %73 = vmatpush1.msra.mxu0 0.0
    %74 = vmatprep.subr.mxu0 0.0
    %75 = vmatpush1.msra.mxu0 0.0
    %76 = vmatprep.subr.mxu0 0.0
    %77 = vmatpush1.msra.mxu0 0.0
    %78 = vmatprep.subr.mxu0 0.0
    %79 = vmatpush1.msra.mxu0 0.0
    %80 = vmatprep.subr.mxu0 0.0
    %81 = vmatpush1.msra.mxu0 0.0
    %82 = vmatprep.subr.mxu0 0.0
    %83 = vmatpush1.msra.mxu0 0.0
    %84 = vmatprep.subr.mxu0 0.0
    %85 = vmatpush1.msra.mxu0 %v55
    %86 = vmatprep.subr.mxu0 0.0
    %87 = vmatpush1.msra.mxu0 %v54
    %88 = vmatprep.subr.mxu0 0.0
    %89 = vmatpush1.msra.mxu0 %v53
    %90 = vmatprep.subr.mxu0 0.0
    %91 = vmatpush1.msra.mxu0 %v52
    %92 = vmatprep.subr.mxu0 0.0
    %93 = vmatpush2.msra.mxu0 0.0
    %94 = vmatprep.subr.mxu0 0.0
    %95 = vmatpush2.msra.mxu0 0.0
    %96 = vmatprep.subr.mxu0 0.0
    %97 = vmatpush2.msra.mxu0 0.0
    %98 = vmatprep.subr.mxu0 0.0
    %99 = vmatpush2.msra.mxu0 0.0
    %100 = vmatprep.subr.mxu0 0.0
    %101 = vmatpush2.msra.mxu0 0.0
    %102 = vmatprep.subr.mxu0 0.0
    %103 = vmatpush2.msra.mxu0 0.0
    %104 = vmatprep.subr.mxu0 0.0
    %105 = vmatpush2.msra.mxu0 0.0
    %106 = vmatprep.subr.mxu0 0.0
    %107 = vmatpush2.msra.mxu0 0.0
    %108 = vmatprep.subr.mxu0 0.0
    %109 = vmatpush2.msra.mxu0 0.0
    %110 = vmatprep.subr.mxu0 0.0
    %111 = vmatpush2.msra.mxu0 0.0
    %112 = vmatprep.subr.mxu0 0.0
    %113 = vmatpush2.msra.mxu0 0.0
    %114 = vmatprep.subr.mxu0 0.0
    %115 = vmatpush2.msra.mxu0 0.0
    %116 = vmatprep.subr.mxu0 0.0
    %117 = vmatpush2.msra.mxu0 0.0
    %118 = vmatprep.subr.mxu0 0.0
    %119 = vmatpush2.msra.mxu0 0.0
    %120 = vmatprep.subr.mxu0 0.0
    %121 = vmatpush2.msra.mxu0 0.0
    %122 = vmatprep.subr.mxu0 0.0
    %123 = vmatpush2.msra.mxu0 0.0
    %124 = vmatprep.mubr.f32.mxu0 0.0
    %125 = vmatmul.mubr.f32.gmra.mxu0 %v58
    %v126 = vpop.f32.mrf.mxu0
    %v127 = vadd.f32 0.0, %v126
    %v128 = vpop.f32.mrf.mxu0
    %129 = vdwg.mxu0
    %v130 = vrot.slane %v127, 4
    %v131 = vadd.f32 %v127, %v130
    %v132 = vrot.slane %v131, 2
    %v133 = vadd.f32 %v131, %v132
    %v134 = vrot.slane %v133, 1
    %v135 = vadd.f32 %v133, %v134
    %v136 = vrcp.pop 8.0
    %v137 = vmul.f32 %v135, %v136
    %v138 = vsub.f32 %v127, %v137
    %v139 = vmul.f32 %v138, %v138
    %v140 = vrot.slane %v139, 4
    %v141 = vadd.f32 %v139, %v140
    %v142 = vrot.slane %v141, 2
    %v143 = vadd.f32 %v141, %v142
    %v144 = vrot.slane %v143, 1
    %v145 = vadd.f32 %v143, %v144
    %v146 = vmul.f32 %v145, %v136
    %v147 = vadd.f32 %v146, 1e-05
    %v148 = vrsqrt.pop %v147
    %v149 = vmul.f32 %v51, %v148
    %v150 = vlaneseq
    %v151 = vshrl.u32 %v150, 7
    %v152 = vsub.s32 0, %v151
    %v153 = vrot.slane %v149, %v152
    %v154 = vmul.f32 %v138, %v153
    %v155 = vlaneseq
    %v156 = vshrl.u32 %v155, 7
    %v157 = vsub.s32 1, %v156
    %v158 = vrot.slane %v51, %v157
    %v159 = vadd.f32 %v154, %v158
    %v160 = vmax.f32 %v159, 0.0
    %v161 = vld [vmem:[%s2] sm:$0xff]
    %v162 = vld [vmem:[%s2 + $0x8] sm:$0xff]
    %v163 = vld [vmem:[%s2 + $0x10] sm:$0xff]
    %v164 = vld [vmem:[%s2 + $0x18] sm:$0xff]
    %v165 = vld [vmem:[%s2 + $0x20] sm:$0xff]
    %v166 = vld [vmem:[%s2 + $0x28] sm:$0xff]
    %v167 = vld [vmem:[%s2 + $0x30] sm:$0xff]
    %v168 = vld [vmem:[%s2 + $0x38] sm:$0xff]
    %v169 = vld [vmem:[%s2 + $0x40] sm:$0xff]
    %v170 = vld [vmem:[%s2 + $0x48] sm:$0xff]
    %v171 = vld [vmem:[%s2 + $0x50] sm:$0xff]
    %v172 = vld [vmem:[%s2 + $0x58] sm:$0xff]
    %v173 = vld [vmem:[%s2 + $0x60] sm:$0xff]
    %v174 = vld [vmem:[%s2 + $0x68] sm:$0xff]
    %v175 = vld [vmem:[%s2 + $0x70] sm:$0xff]
    %v176 = vld [vmem:[%s2 + $0x78] sm:$0xff]
    %177 = vmatprep.subr.mxu0 0.0
    %178 = vmatpush1.msra.mxu0 %v176
    %179 = vmatprep.subr.mxu0 0.0
    %180 = vmatpush1.msra.mxu0 %v175
    %181 = vmatprep.subr.mxu0 0.0
    %182 = vmatpush1.msra.mxu0 %v174
    %183 = vmatprep.subr.mxu0 0.0
    %184 = vmatpush1.msra.mxu0 %v173
    %185 = vmatprep.subr.mxu0 0.0
    %186 = vmatpush1.msra.mxu0 %v172
    %187 = vmatprep.subr.mxu0 0.0
    %188 = vmatpush1.msra.mxu0 %v171
    %189 = vmatprep.subr.mxu0 0.0
    %190 = vmatpush1.msra.mxu0 %v170
    %191 = vmatprep.subr.mxu0 0.0
    %192 = vmatpush1.msra.mxu0 %v169
    %193 = vmatprep.subr.mxu0 0.0
    %194 = vmatpush1.msra.mxu0 %v168
    %195 = vmatprep.subr.mxu0 0.0
    %196 = vmatpush1.msra.mxu0 %v167
    %197 = vmatprep.subr.mxu0 0.0
    %198 = vmatpush1.msra.mxu0 %v166
    %199 = vmatprep.subr.mxu0 0.0
    %200 = vmatpush1.msra.mxu0 %v165
    %201 = vmatprep.subr.mxu0 0.0
    %202 = vmatpush1.msra.mxu0 %v164
    %203 = vmatprep.subr.mxu0 0.0
    %204 = vmatpush1.msra.mxu0 %v163
    %205 = vmatprep.subr.mxu0 0.0
    %206 = vmatpush1.msra.mxu0 %v162
    %207 = vmatprep.subr.mxu0 0.0
    %208 = vmatpush1.msra.mxu0 %v161
    %209 = vmatprep.subr.mxu0 0.0
    %210 = vmatpush2.msra.mxu0 0.0
    %211 = vmatprep.subr.mxu0 0.0
    %212 = vmatpush2.msra.mxu0 0.0
    %213 = vmatprep.subr.mxu0 0.0
    %214 = vmatpush2.msra.mxu0 0.0
    %215 = vmatprep.subr.mxu0 0.0
    %216 = vmatpush2.msra.mxu0 0.0
    %217 = vmatprep.subr.mxu0 0.0
    %218 = vmatpush2.msra.mxu0 0.0
    %219 = vmatprep.subr.mxu0 0.0
    %220 = vmatpush2.msra.mxu0 0.0
    %221 = vmatprep.subr.mxu0 0.0
    %222 = vmatpush2.msra.mxu0 0.0
    %223 = vmatprep.subr.mxu0 0.0
    %224 = vmatpush2.msra.mxu0 0.0
    %225 = vmatprep.subr.mxu0 0.0
    %226 = vmatpush2.msra.mxu0 0.0
    %227 = vmatprep.subr.mxu0 0.0
    %228 = vmatpush2.msra.mxu0 0.0
    %229 = vmatprep.subr.mxu0 0.0
    %230 = vmatpush2.msra.mxu0 0.0
    %231 = vmatprep.subr.mxu0 0.0
    %232 = vmatpush2.msra.mxu0 0.0
    %233 = vmatprep.subr.mxu0 0.0
    %234 = vmatpush2.msra.mxu0 0.0
    %235 = vmatprep.subr.mxu0 0.0
    %236 = vmatpush2.msra.mxu0 0.0
    %237 = vmatprep.subr.mxu0 0.0
    %238 = vmatpush2.msra.mxu0 0.0
    %239 = vmatprep.subr.mxu0 0.0
    %240 = vmatpush2.msra.mxu0 0.0
    %241 = vmatprep.mubr.f32.mxu0 0.0
    %242 = vmatmul.mubr.f32.gmra.mxu0 %v160
    %v243 = vpop.f32.mrf.mxu0
    %v244 = vadd.f32 0.0, %v243
    %v245 = vpop.f32.mrf.mxu0
    %246 = vdwg.mxu0
    %v247 = vrot.slane %v244, 4
    %v248 = vadd.f32 %v244, %v247
    %v249 = vrot.slane %v248, 2
    %v250 = vadd.f32 %v248, %v249
    %v251 = vrot.slane %v250, 1
    %v252 = vadd.f32 %v250, %v251
    %v253 = vmul.f32 %v252, %v136
    %v254 = vsub.f32 %v244, %v253
    %v255 = vmul.f32 %v254, %v254
    %v256 = vrot.slane %v255, 4
    %v257 = vadd.f32 %v255, %v256
    %v258 = vrot.slane %v257, 2
    %v259 = vadd.f32 %v257, %v258
    %v260 = vrot.slane %v259, 1
    %v261 = vadd.f32 %v259, %v260
    %v262 = vmul.f32 %v261, %v136
    %v263 = vadd.f32 %v262, 1e-05
    %v264 = vrsqrt.pop %v263
    %v265 = vmul.f32 %v51, %v264
    %v266 = vlaneseq
    %v267 = vshrl.u32 %v266, 7
    %v268 = vsub.s32 2, %v267
    %v269 = vrot.slane %v265, %v268
    %v270 = vmul.f32 %v254, %v269
    %v271 = vlaneseq
    %v272 = vshrl.u32 %v271, 7
    %v273 = vsub.s32 3, %v272
    %v274 = vrot.slane %v51, %v273
    %v275 = vadd.f32 %v270, %v274
    %v276 = vmax.f32 %v275, 0.0
    %v277 = vld [vmem:[%s3] sm:$0xff]
    %v278 = vld [vmem:[%s3 + $0x8] sm:$0xff]
    %v279 = vld [vmem:[%s3 + $0x10] sm:$0xff]
    %v280 = vld [vmem:[%s3 + $0x18] sm:$0xff]
    %v281 = vld [vmem:[%s3 + $0x20] sm:$0xff]
    %v282 = vld [vmem:[%s3 + $0x28] sm:$0xff]
    %v283 = vld [vmem:[%s3 + $0x30] sm:$0xff]
    %v284 = vld [vmem:[%s3 + $0x38] sm:$0xff]
    %v285 = vld [vmem:[%s3 + $0x40] sm:$0xff]
    %v286 = vld [vmem:[%s3 + $0x48] sm:$0xff]
    %v287 = vld [vmem:[%s3 + $0x50] sm:$0xff]
    %v288 = vld [vmem:[%s3 + $0x58] sm:$0xff]
    %v289 = vld [vmem:[%s3 + $0x60] sm:$0xff]
    %v290 = vld [vmem:[%s3 + $0x68] sm:$0xff]
    %v291 = vld [vmem:[%s3 + $0x70] sm:$0xff]
    %v292 = vld [vmem:[%s3 + $0x78] sm:$0xff]
    %v293 = vld [vmem:[%s5] sm:$0x1]
    %v295 = vlaneseq
    %v296 = vshrl.u32 %v295, 7
    %v297 = vsub.s32 0, %v296
    %v298 = vrot.slane %v293, %v297
    %300 = vmatprep.subr.mxu0 0.0
    %301 = vmatpush1.msra.mxu0 %v292
    %302 = vmatprep.subr.mxu0 0.0
    %303 = vmatpush1.msra.mxu0 %v291
    %304 = vmatprep.subr.mxu0 0.0
    %305 = vmatpush1.msra.mxu0 %v290
    %306 = vmatprep.subr.mxu0 0.0
    %307 = vmatpush1.msra.mxu0 %v289
    %308 = vmatprep.subr.mxu0 0.0
    %309 = vmatpush1.msra.mxu0 %v288
    %310 = vmatprep.subr.mxu0 0.0
    %311 = vmatpush1.msra.mxu0 %v287
    %312 = vmatprep.subr.mxu0 0.0
    %313 = vmatpush1.msra.mxu0 %v286
    %314 = vmatprep.subr.mxu0 0.0
    %315 = vmatpush1.msra.mxu0 %v285
    %316 = vmatprep.subr.mxu0 0.0
    %317 = vmatpush1.msra.mxu0 %v284
    %318 = vmatprep.subr.mxu0 0.0
    %319 = vmatpush1.msra.mxu0 %v283
    %320 = vmatprep.subr.mxu0 0.0
    %321 = vmatpush1.msra.mxu0 %v282
    %322 = vmatprep.subr.mxu0 0.0
    %323 = vmatpush1.msra.mxu0 %v281
    %324 = vmatprep.subr.mxu0 0.0
    %325 = vmatpush1.msra.mxu0 %v280
    %326 = vmatprep.subr.mxu0 0.0
    %327 = vmatpush1.msra.mxu0 %v279
    %328 = vmatprep.subr.mxu0 0.0
    %329 = vmatpush1.msra.mxu0 %v278
    %330 = vmatprep.subr.mxu0 0.0
    %331 = vmatpush1.msra.mxu0 %v277
    %332 = vmatprep.subr.mxu0 0.0
    %333 = vmatpush2.msra.mxu0 0.0
    %334 = vmatprep.subr.mxu0 0.0
    %335 = vmatpush2.msra.mxu0 0.0
    %336 = vmatprep.subr.mxu0 0.0
    %337 = vmatpush2.msra.mxu0 0.0
    %338 = vmatprep.subr.mxu0 0.0
    %339 = vmatpush2.msra.mxu0 0.0
    %340 = vmatprep.subr.mxu0 0.0
    %341 = vmatpush2.msra.mxu0 0.0
    %342 = vmatprep.subr.mxu0 0.0
    %343 = vmatpush2.msra.mxu0 0.0
    %344 = vmatprep.subr.mxu0 0.0
    %345 = vmatpush2.msra.mxu0 0.0
    %346 = vmatprep.subr.mxu0 0.0
    %347 = vmatpush2.msra.mxu0 0.0
    %348 = vmatprep.subr.mxu0 0.0
    %349 = vmatpush2.msra.mxu0 0.0
    %350 = vmatprep.subr.mxu0 0.0
    %351 = vmatpush2.msra.mxu0 0.0
    %352 = vmatprep.subr.mxu0 0.0
    %353 = vmatpush2.msra.mxu0 0.0
    %354 = vmatprep.subr.mxu0 0.0
    %355 = vmatpush2.msra.mxu0 0.0
    %356 = vmatprep.subr.mxu0 0.0
    %357 = vmatpush2.msra.mxu0 0.0
    %358 = vmatprep.subr.mxu0 0.0
    %359 = vmatpush2.msra.mxu0 0.0
    %360 = vmatprep.subr.mxu0 0.0
    %361 = vmatpush2.msra.mxu0 0.0
    %362 = vmatprep.subr.mxu0 0.0
    %363 = vmatpush2.msra.mxu0 0.0
    %364 = vmatprep.mubr.f32.mxu0 0.0
    %365 = vmatmul.mubr.f32.gmra.mxu0 %v276
    %v366 = vpop.f32.mrf.mxu0
    %v367 = vadd.f32 %v298, %v366
    %v368 = vpop.f32.mrf.mxu0
    %369 = vdwg.mxu0
    %v370 = vxor.u32 %v367, 2147483648
    %v371 = vmul.f32 %v370, 1.442695
    %v372 = vpow.pop %v371
    %v373 = vadd.f32 %v372, 1.0
    %v374 = vrcp.pop %v373
    %v375 = vmul.f32 1.0, %v374
    %vm376 = vcmask 64512
    %377 = vst.msk [vmem:[#allocation7] sm:$0xff] %vm376, %v375
    // Predicated region
    $region34: #{forward.1} parent=1 // pred_check
      _
    $region35: #{forward.1} parent=1 // pred_check_branch
      %379 = sbr.rel (0) target = $region37
    $region36: #{forward.1} parent=1 // pred_region
      %s381 = ssub.s32 128, 128
      %382 = vsyncadd [#allocation4], %s381
      %s384 = sshll.u32 [#allocation7], 4
      %s385 = int_to_ptr.vmem [resolvable:$true] %s384
      %387 = dma.vmem_to_hbm [thread:$0]  %s385, 128, %s6, [#allocation4]
    $region37: #{forward.1} parent=1 // pred_fallthru
      _
    // Predicated region
    $region38: #{forward.1} parent=1 // pred_check
      _
    $region39: #{forward.1} parent=1 // pred_check_branch
      %389 = sbr.rel (0) target = $region41
    $region40: #{forward.1} parent=1 // pred_region
      %390 = dma.done [#allocation4], 128
    $region41: #{forward.1} parent=1 // pred_fallthru
      _
    %391 = vsyncpa [#allocation3], 1
    %392 = vsyncpa [#allocation6], 1
    %393 = vsyncpa [#allocation4], 1

</llo_original>
